<compile_context>
chip_gen: v6e
topology: v6e:2x2x1
jax: 0.10.0
libtpu: 0.0.40
codegen_flags: <defaults>
</compile_context>

<pallas_src>
import jax
import jax.numpy as jnp
from jax.experimental import pallas as pl
from jax.experimental.pallas import tpu as pltpu

MIB = 1024 * 1024


def fx_bert_kernel(hidden_ref, focus_ref, w_ref, b_ref, logits_ref, acc_ref):
    # hidden_ref : (tb, ts, D)   bert_text_out tile (streamed dtype, e.g. bf16)
    # focus_ref  : (tb, ts, 1)   f32 focus / S  (mean normalization folded in)
    # w_ref      : (D, Ppad)     dense weight (transposed, zero-padded), f32
    # b_ref      : (1, Ppad)     dense bias (zero-padded), f32
    # logits_ref : (tb, Ppad)    output tile (resident across the seq axis)
    # acc_ref    : (tb, D) f32   pooled accumulator (VMEM scratch)
    si = pl.program_id(1)

    @pl.when(si == 0)
    def _init():
        acc_ref[...] = jnp.zeros_like(acc_ref)

    # VPU lane-broadcast multiply + XLU sublane reduce over the seq tile.
    # Keeps the per-step compute in issue slots the streaming DMA doesn't use,
    # so the kernel stays HBM-bandwidth-bound (no MXU weight-push with reuse=1).
    weighted = hidden_ref[...].astype(jnp.float32) * focus_ref[...]
    acc_ref[...] += jnp.sum(weighted, axis=1)

    @pl.when(si == pl.num_programs(1) - 1)
    def _finalize():
        # pooled @ W + b, once per batch tile (tiny MXU matmul + bias).
        logits = jnp.dot(acc_ref[...], w_ref[...],
                         preferred_element_type=jnp.float32)
        logits_ref[...] = (logits + b_ref[...]).astype(logits_ref.dtype)


def _tpu_vmem_capacity_bytes():
    try:
        return int(pltpu.get_tpu_info().vmem_capacity_bytes)
    except Exception:
        return 128 * MIB  # v5e/v6e default; conservative enough elsewhere


def _pick_batch_tile(b, max_tb=16):
    """Largest legal batch tile, preferring >= 2 batch grid steps (megacore).

    The 2-D output block is (tb, P_pad), so tb must be a multiple of 8 or equal
    to B for legal (8, 128) tiling of the output.
    """
    legal = [d for d in range(min(b, max_tb), 0, -1)
             if b % d == 0 and (d % 8 == 0 or d == b)]
    for d in legal:                      # prefer B // tb >= 2 (v7x: 2 TCs)
        if b // d >= 2:
            return d
    return legal[0] if legal else b


def _pick_seq_tile(s, tb, d, itemsize, tile_budget_bytes):
    """Largest seq tile dividing S, legal for (8,128) tiling, within budget."""
    legal = [t for t in range(s, 0, -1)
             if s % t == 0 and (t == s or t % 8 == 0)]
    for t in legal:
        if tb * t * d * itemsize <= tile_budget_bytes:
            return t
    return legal[-1]   # smallest legal tile; may exceed budget for odd S


def _vmem_limit_bytes(tb, ts, d, p_pad, hidden_itemsize, vmem_cap):
    """Right-size the scoped-VMEM limit; None -> keep the compiler default."""
    hidden_blk = tb * ts * d * hidden_itemsize
    focus_blk = tb * ts * 4
    out_blk = tb * p_pad * 4
    w = d * p_pad * 4
    bias = p_pad * 4
    acc = tb * d * 4
    # double-buffered pipelined operands (conservative: count W/bias twice)
    need = 2 * (hidden_blk + focus_blk + out_blk + w + bias) + acc
    limit = need + 2 * MIB               # slack for Mosaic internal scratch
    if limit <= 32 * MIB:                # fits the default scoped VMEM
        return None
    return min(limit, (vmem_cap * 3) // 4)   # always leave headroom (v7x: 64 MiB)


def fx_bert_forward(bert_text_out, focus_vector, dense_w_t, dense_b,
                    stream_dtype=jnp.bfloat16):
    B, S, D = bert_text_out.shape
    P = dense_w_t.shape[1]
    P_pad = max(128, ((P + 127) // 128) * 128)   # lane-dense output stores

    # Stream the big operand in bf16 (bandwidth-bound kernel); math stays f32.
    hidden = bert_text_out.astype(stream_dtype)
    h_isz = jnp.dtype(stream_dtype).itemsize

    # Fold 1/S into focus in f32 (pooling weights are NOT rounded to bf16);
    # lay it out as (B, S, 1) so the in-kernel multiply is a lane broadcast.
    focus_scaled = (focus_vector.astype(jnp.float32) * (1.0 / S)).reshape(B, S, 1)

    # Zero-pad W / bias to a lane-dense output width; real logits sliced below.
    w_pad = jnp.zeros((D, P_pad), jnp.float32).at[:, :P].set(
        dense_w_t.astype(jnp.float32))
    b_pad = jnp.zeros((1, P_pad), jnp.float32).at[0, :P].set(
        dense_b.astype(jnp.float32))

    # Generation-aware tiling: ~8 MiB hidden tiles on 64 MiB-VMEM parts (v7x),
    # ~16 MiB on 128 MiB parts (v5e/v6e) to sit near the HBM roofline.
    vmem_cap = _tpu_vmem_capacity_bytes()
    tile_budget = 8 * MIB if vmem_cap <= 64 * MIB else 16 * MIB
    tb = _pick_batch_tile(B)
    ts = _pick_seq_tile(S, tb, D, h_isz, tile_budget)
    grid = (B // tb, S // ts)

    cost = pl.CostEstimate(
        flops=2 * B * S * D + 2 * B * D * P_pad,
        transcendentals=0,
        bytes_accessed=(B * S * D * h_isz + B * S * 4
                        + D * P_pad * 4 + P_pad * 4 + B * P_pad * 4),
    )

    out_pad = pl.pallas_call(
        fx_bert_kernel,
        out_shape=jax.ShapeDtypeStruct((B, P_pad), jnp.float32),
        grid=grid,
        in_specs=[
            pl.BlockSpec((tb, ts, D), lambda bi, si: (bi, si, 0)),   # hidden
            pl.BlockSpec((tb, ts, 1), lambda bi, si: (bi, si, 0)),   # focus/S
            # NOTE: W / bias are grid-invariant; on v7x they could be single-
            # buffered (pipeline_mode=pl.Buffered(1)) to save ~0.5 MiB of VMEM.
            pl.BlockSpec((D, P_pad), lambda bi, si: (0, 0)),         # W
            pl.BlockSpec((1, P_pad), lambda bi, si: (0, 0)),         # bias
        ],
        out_specs=pl.BlockSpec((tb, P_pad), lambda bi, si: (bi, 0)),
        scratch_shapes=[pltpu.VMEM((tb, D), jnp.float32)],
        compiler_params=pltpu.CompilerParams(
            # batch: parallel (v7x megacore); seq: reduction -> MUST stay last
            # and "arbitrary" (output block + acc are resident across it).
            dimension_semantics=("parallel", "arbitrary"),
            vmem_limit_bytes=_vmem_limit_bytes(tb, ts, D, P_pad, h_isz, vmem_cap),
        ),
        cost_estimate=cost,
    )(hidden, focus_scaled, w_pad, b_pad)

    return out_pad[:, :P]


def reference_forward(bert_text_out_f32, focus_vector, dense_w_t, dense_b):
    weighted = bert_text_out_f32.astype(jnp.float32) * \
        focus_vector.astype(jnp.float32)[:, :, None]
    pooled = jnp.mean(weighted, axis=1)
    return pooled @ dense_w_t.astype(jnp.float32) + dense_b.astype(jnp.float32)


if __name__ == "__main__":
    # opt: max_seq_len=8, bert_dim=32, polarities_dim=3, dropout (eval -> id)
    batch = 2
    max_seq_len = 8
    bert_dim = 32
    polarities_dim = 3

    key = jax.random.PRNGKey(0)
    k_hidden, k_focus, k_w, k_b = jax.random.split(key, 4)

    # Stand-in for bert_local(text_local_indices)[0]  (hidden states).
    bert_text_out = jax.random.normal(
        k_hidden, (batch, max_seq_len, bert_dim), dtype=jnp.float32)
    focus_vector = jax.random.uniform(
        k_focus, (batch, max_seq_len), dtype=jnp.float32)

    # Deterministic nn.Linear(bert_dim, polarities_dim) params.
    # PyTorch weight is (P, D); stored transposed as (D, P) for the kernel.
    dense_w_t = 0.02 * jax.random.normal(
        k_w, (bert_dim, polarities_dim), dtype=jnp.float32)
    dense_b = 0.01 * jax.random.normal(
        k_b, (polarities_dim,), dtype=jnp.float32)

    logits = fx_bert_forward(bert_text_out, focus_vector, dense_w_t, dense_b)
    logits = jax.block_until_ready(logits)

    # Reference uses the same bf16-rounded hidden states the kernel streams,
    # so the comparison isolates kernel arithmetic (f32 accumulation).
    hidden_bf16_as_f32 = bert_text_out.astype(jnp.bfloat16).astype(jnp.float32)
    ref = reference_forward(hidden_bf16_as_f32, focus_vector, dense_w_t, dense_b)

    assert logits.shape == (batch, polarities_dim)
    assert jnp.allclose(logits, ref, atol=1e-3, rtol=1e-3), (logits, ref)

    print("KERNEL_OK")
</pallas_src>

<mosaic_0001>
module attributes {stable_mosaic.version = 11 : i64} {
  func.func @fx_bert_kernel(%arg0: i32, %arg1: i32, %arg2: memref<2x8x32xbf16, #tpu.memory_space<vmem>>, %arg3: memref<2x8x1xf32, #tpu.memory_space<vmem>>, %arg4: memref<32x128xf32, #tpu.memory_space<vmem>>, %arg5: memref<1x128xf32, #tpu.memory_space<vmem>>, %arg6: memref<2x128xf32, #tpu.memory_space<vmem>>, %arg7: memref<2x32xf32, #tpu.memory_space<vmem>>) attributes {dimension_semantics = [#tpu.dimension_semantics<parallel>, #tpu.dimension_semantics<arbitrary>], iteration_bounds = array<i64: 1, 1>, scalar_prefetch = 0 : i64, scratch_operands = 1 : i64, tpu.core_type = #tpu.core_type<tc>, window_params = [{transform_indices = @transform_0, window_bounds = array<i64: 2, 8, 32>}, {transform_indices = @transform_1, window_bounds = array<i64: 2, 8, 1>}, {pipeline_mode = #tpu.pipeline_mode<synchronous>, transform_indices = @transform_2, window_bounds = array<i64: 32, 128>}, {pipeline_mode = #tpu.pipeline_mode<synchronous>, transform_indices = @transform_3, window_bounds = array<i64: 1, 128>}, {transform_indices = @transform_4, window_bounds = array<i64: 2, 128>}]} {
    %c0_i32 = arith.constant 0 : i32
    %0 = arith.cmpi eq, %arg1, %c0_i32 : i32
    %1 = arith.extui %0 : i1 to i32
    %c0_i32_0 = arith.constant 0 : i32
    %2 = arith.cmpi ne, %1, %c0_i32_0 : i32
    scf.if %2 {
      %cst_12 = arith.constant 0.000000e+00 : f32
      %15 = vector.broadcast %cst_12 : f32 to vector<2x32xf32>
      %c0_13 = arith.constant 0 : index
      %c0_14 = arith.constant 0 : index
      %16 = vector.load %arg7[%c0_13, %c0_14] : memref<2x32xf32, #tpu.memory_space<vmem>>, vector<2x32xf32>
      tpu.vector_store %arg7[%c0_13, %c0_14], %15 {strides = array<i32>} : memref<2x32xf32, #tpu.memory_space<vmem>>, vector<2x32xf32>,
    } else {
    }
    %c0 = arith.constant 0 : index
    %c0_1 = arith.constant 0 : index
    %c0_2 = arith.constant 0 : index
    %3 = vector.load %arg2[%c0, %c0_1, %c0_2] : memref<2x8x32xbf16, #tpu.memory_space<vmem>>, vector<2x8x32xbf16>
    %4 = arith.extf %3 : vector<2x8x32xbf16> to vector<2x8x32xf32>
    %c0_3 = arith.constant 0 : index
    %c0_4 = arith.constant 0 : index
    %c0_5 = arith.constant 0 : index
    %5 = vector.load %arg3[%c0_3, %c0_4, %c0_5] : memref<2x8x1xf32, #tpu.memory_space<vmem>>, vector<2x8x1xf32>
    %6 = vector.broadcast %5 : vector<2x8x1xf32> to vector<2x8x32xf32>
    %7 = arith.mulf %4, %6 : vector<2x8x32xf32>
    %c0_6 = arith.constant 0 : index
    %c0_7 = arith.constant 0 : index
    %8 = vector.load %arg7[%c0_6, %c0_7] : memref<2x32xf32, #tpu.memory_space<vmem>>, vector<2x32xf32>
    %cst = arith.constant dense<0.000000e+00> : vector<2x32xf32>
    %9 = vector.multi_reduction <add>, %7, %cst [1] : vector<2x8x32xf32> to vector<2x32xf32>
    %10 = arith.addf %8, %9 : vector<2x32xf32>
    %c0_8 = arith.constant 0 : index
    %c0_9 = arith.constant 0 : index
    %11 = vector.load %arg7[%c0_8, %c0_9] : memref<2x32xf32, #tpu.memory_space<vmem>>, vector<2x32xf32>
    tpu.vector_store %arg7[%c0_8, %c0_9], %10 {strides = array<i32>} : memref<2x32xf32, #tpu.memory_space<vmem>>, vector<2x32xf32>,
    %c0_i32_10 = arith.constant 0 : i32
    %12 = arith.cmpi eq, %arg1, %c0_i32_10 : i32
    %13 = arith.extui %12 : i1 to i32
    %c0_i32_11 = arith.constant 0 : i32
    %14 = arith.cmpi ne, %13, %c0_i32_11 : i32
    scf.if %14 {
      %c0_12 = arith.constant 0 : index
      %c0_13 = arith.constant 0 : index
      %15 = vector.load %arg7[%c0_12, %c0_13] : memref<2x32xf32, #tpu.memory_space<vmem>>, vector<2x32xf32>
      %c0_14 = arith.constant 0 : index
      %c0_15 = arith.constant 0 : index
      %16 = vector.load %arg4[%c0_14, %c0_15] : memref<32x128xf32, #tpu.memory_space<vmem>>, vector<32x128xf32>
      %cst_16 = arith.constant dense<0.000000e+00> : vector<2x128xf32>
      %17 = tpu.matmul %15, %16, %cst_16 {dimension_numbers = #tpu.dot_dimension_numbers<[1], [0], [0], [1], [0, 0, 1, 1], [], []>} : vector<2x32xf32>, vector<32x128xf32>, vector<2x128xf32> -> vector<2x128xf32>
      %c0_17 = arith.constant 0 : index
      %c0_18 = arith.constant 0 : index
      %18 = vector.load %arg5[%c0_17, %c0_18] : memref<1x128xf32, #tpu.memory_space<vmem>>, vector<1x128xf32>
      %19 = vector.broadcast %18 : vector<1x128xf32> to vector<2x128xf32>
      %20 = arith.addf %17, %19 : vector<2x128xf32>
      %c0_19 = arith.constant 0 : index
      %c0_20 = arith.constant 0 : index
      %21 = vector.load %arg6[%c0_19, %c0_20] : memref<2x128xf32, #tpu.memory_space<vmem>>, vector<2x128xf32>
      tpu.vector_store %arg6[%c0_19, %c0_20], %20 {strides = array<i32>} : memref<2x128xf32, #tpu.memory_space<vmem>>, vector<2x128xf32>,
    } else {
    }
    return
  }
  func.func @transform_0(%arg0: i32, %arg1: i32) -> (i32, i32, i32) {
    %c0_i32 = arith.constant 0 : i32
    %c0_i32_0 = arith.constant 0 : i32
    return %arg0, %arg1, %c0_i32 : i32, i32, i32
  }
  func.func @transform_1(%arg0: i32, %arg1: i32) -> (i32, i32, i32) {
    %c0_i32 = arith.constant 0 : i32
    %c0_i32_0 = arith.constant 0 : i32
    return %arg0, %arg1, %c0_i32 : i32, i32, i32
  }
  func.func @transform_2(%arg0: i32, %arg1: i32) -> (i32, i32) {
    %c0_i32 = arith.constant 0 : i32
    %c0_i32_0 = arith.constant 0 : i32
    %c0_i32_1 = arith.constant 0 : i32
    return %c0_i32, %c0_i32_0 : i32, i32
  }
  func.func @transform_3(%arg0: i32, %arg1: i32) -> (i32, i32) {
    %c0_i32 = arith.constant 0 : i32
    %c0_i32_0 = arith.constant 0 : i32
    %c0_i32_1 = arith.constant 0 : i32
    return %c0_i32, %c0_i32_0 : i32, i32
  }
  func.func @transform_4(%arg0: i32, %arg1: i32) -> (i32, i32) {
    %c0_i32 = arith.constant 0 : i32
    %c0_i32_0 = arith.constant 0 : i32
    return %arg0, %c0_i32 : i32, i32
  }
}

</mosaic_0001>

<llo_original>
// kernel: tpu_custom_call.1
$region0: #{tpu_custom_call.1}
  #allocation0 [shape = 'u32[]', space=smem, size = 0x4, offset = 0x4, fixed_abs, tag = 'smem constant byte address 0x4 - core index']
  #allocation1 [shape = 'u32[144,128]{1,0:T(1,128)}', space=vmem, size = 0x12000, scoped, tag = 'internal scratch']
  #allocation2 [shape = 'f32[2,32]{1,0:T(2,128)}', space=vmem, size = 0x400, scoped, tag = 'scratch operand']
  %s0 = inlined_call_operand.vmem [shape: bf16[2,8,32], index: 0, kind: input, shape index: {}]
  %s1 = inlined_call_operand.vmem [shape: f32[2,8,1], index: 1, kind: input, shape index: {}]
  %s2 = inlined_call_operand.hbm [shape: f32[32,128], index: 2, kind: input, shape index: {}]
  %s3 = inlined_call_operand.vmem [shape: f32[1,128], index: 3, kind: input, shape index: {}]
  %s4 = inlined_call_operand.hbm [shape: f32[2,128], index: 4, kind: output, shape index: {}]
  %s5 = sld [smem:[#allocation0]]
  $region38: #{tpu_custom_call.1} parent=0
    _
  %s7 = ssub.s32 1, %s5
  %s8 = scalar_select 0, %s7, %s5
  $region1: #{tpu_custom_call.1} parent=0
    #allocation3 [shape = 'u8[16384]{0}', space=vmem, size = 0x4000, scoped, tag = 'input window, operand 2, single buffered']
    #allocation4 [shape = 's32[1]{0}', space=sflag, size = 0x4, scoped, tag = 'scoped memory for tpu_custom_call.1']
    #allocation5 [shape = 's32[1]{0}', space=sflag, size = 0x4, scoped, tag = 'scoped memory for tpu_custom_call.1']
    #allocation6 [shape = 'u8[1024]{0}', space=vmem, size = 0x400, scoped, tag = 'output window, operand 0, single buffered']
    %9 = vsyncpa [#allocation4], 0
    %10 = vsyncpa [#allocation5], 0
    // Predicated region
    $region2: #{tpu_custom_call.1} parent=1 // pred_check
      _
    $region3: #{tpu_custom_call.1} parent=1 // pred_check_branch
      %12 = sbr.rel (0) target = $region5
    $region4: #{tpu_custom_call.1} parent=1 // pred_region
      _
    $region5: #{tpu_custom_call.1} parent=1 // pred_fallthru
      _
    // Predicated region
    $region6: #{tpu_custom_call.1} parent=1 // pred_check
      _
    $region7: #{tpu_custom_call.1} parent=1 // pred_check_branch
      %14 = sbr.rel (0) target = $region9
    $region8: #{tpu_custom_call.1} parent=1 // pred_region
      _
    $region9: #{tpu_custom_call.1} parent=1 // pred_fallthru
      _
    // Predicated region
    $region10: #{tpu_custom_call.1} parent=1 // pred_check
      _
    $region11: #{tpu_custom_call.1} parent=1 // pred_check_branch
      %16 = sbr.rel (0) target = $region13
    $region12: #{tpu_custom_call.1} parent=1 // pred_region
      %s18 = ssub.s32 512, 512
      %19 = vsyncadd [#allocation4], %s18
      %s20 = sshll.u32 [#allocation3], 4
      %s21 = int_to_ptr.vmem [resolvable:$true] %s20
      %26 = dma.hbm_to_vmem [thread:$0]  %s2, 512, %s21, [#allocation4], 128, 128, 8
    $region13: #{tpu_custom_call.1} parent=1 // pred_fallthru
      _
    // Predicated region
    $region14: #{tpu_custom_call.1} parent=1 // pred_check
      _
    $region15: #{tpu_custom_call.1} parent=1 // pred_check_branch
      %28 = sbr.rel (0) target = $region17
    $region16: #{tpu_custom_call.1} parent=1 // pred_region
      _
    $region17: #{tpu_custom_call.1} parent=1 // pred_fallthru
      _
    // Predicated region
    $region18: #{tpu_custom_call.1} parent=1 // pred_check
      _
    $region19: #{tpu_custom_call.1} parent=1 // pred_check_branch
      %30 = sbr.rel (0) target = $region21
    $region20: #{tpu_custom_call.1} parent=1 // pred_region
      %31 = dma.done [#allocation4], 512
    $region21: #{tpu_custom_call.1} parent=1 // pred_fallthru
      _
    %p32 = scmp.eq.s32.totalorder 0, 0
    // Predicated region
    $region22: #{tpu_custom_call.1} parent=1 // pred_check
      %p33 = pneg %p32
    $region23: #{tpu_custom_call.1} parent=1 // pred_check_branch
      %35 = sbr.rel (%p33) target = $region25
    $region24: #{tpu_custom_call.1} parent=1 // pred_region
      %vm36 = vcmask 254976
      %37 = vst.msk [vmem:[#allocation2] sm:$0x3] %vm36, 0.0
    $region25: #{tpu_custom_call.1} parent=1 // pred_fallthru
      _
    %v38 = vld [vmem:[%s0] sm:$0xf]
    %v39 = vld [vmem:[%s0 + $0x4] sm:$0xf]
    %v40 = vunpack.c.l.bf16 %v38
    %v41 = vunpack.c.l.bf16 %v39
    %v42 = vld [vmem:[%s1] sm:$0xff]
    %v43 = vld [vmem:[%s1 + $0x8] sm:$0xff]
    %45 = vset.pattern.permute.xlu0 0
    %46 = vperm.xlu0 %45, %v42
    %v47 = vpop.permute.xlu0 %46
    %50 = vset.pattern.permute.xlu0 0
    %51 = vperm.xlu0 %50, %v43
    %v52 = vpop.permute.xlu0 %51
    %v54 = vmul.f32 %v40, %v47
    %v55 = vmul.f32 %v41, %v52
    %v56 = vld [vmem:[#allocation2] sm:$0x3]
    %vm57 = vcmask 261120
    %v58 = vsel %vm57, %v54, 0.0
    %v59 = vrot.slane %v58, 4
    %v60 = vadd.f32 %v58, %v59
    %v61 = vrot.slane %v60, 2
    %v62 = vadd.f32 %v60, %v61
    %v63 = vrot.slane %v62, 1
    %v64 = vadd.f32 %v62, %v63
    %v65 = vsel %vm57, %v55, 0.0
    %v66 = vrot.slane %v65, 4
    %v67 = vadd.f32 %v65, %v66
    %v68 = vrot.slane %v67, 2
    %v69 = vadd.f32 %v67, %v68
    %v70 = vrot.slane %v69, 1
    %v71 = vadd.f32 %v69, %v70
    %vm74 = vcmask 1041409
    %v75 = vsel %vm74, %v71, %v64
    %v77 = vadd.f32 %v56, %v75
    %vm78 = vcmask 254976
    %79 = vst.msk [vmem:[#allocation2] sm:$0x3] %vm78, %v77
    // Predicated region
    $region26: #{tpu_custom_call.1} parent=1 // pred_check
      %p80 = pneg %p32
    $region27: #{tpu_custom_call.1} parent=1 // pred_check_branch
      %82 = sbr.rel (%p80) target = $region29
    $region28: #{tpu_custom_call.1} parent=1 // pred_region
      %v83 = vld [vmem:[#allocation2] sm:$0x3]
      %v84 = vld [vmem:[#allocation3] sm:$0xff]
      %v85 = vld [vmem:[#allocation3 + $0x8] sm:$0xff]
      %v86 = vld [vmem:[#allocation3 + $0x10] sm:$0xff]
      %v87 = vld [vmem:[#allocation3 + $0x18] sm:$0xff]
      %v88 = vld [vmem:[%s3] sm:$0x1]
      %v90 = vlaneseq
      %v91 = vshrl.u32 %v90, 7
      %v92 = vsub.s32 0, %v91
      %v93 = vrot.slane %v88, %v92
      %v96 = vsel %vm57, %v83, 0
      %98 = vmatprep.subr.mxu0 0.0
      %99 = vmatpush1.msra.mxu0 0.0
      %100 = vmatprep.subr.mxu0 0.0
      %101 = vmatpush1.msra.mxu0 0.0
      %102 = vmatprep.subr.mxu0 0.0
      %103 = vmatpush1.msra.mxu0 0.0
      %104 = vmatprep.subr.mxu0 0.0
      %105 = vmatpush1.msra.mxu0 0.0
      %106 = vmatprep.subr.mxu0 0.0
      %107 = vmatpush1.msra.mxu0 0.0
      %108 = vmatprep.subr.mxu0 0.0
      %109 = vmatpush1.msra.mxu0 0.0
      %110 = vmatprep.subr.mxu0 0.0
      %111 = vmatpush1.msra.mxu0 0.0
      %112 = vmatprep.subr.mxu0 0.0
      %113 = vmatpush1.msra.mxu0 0.0
      %114 = vmatprep.subr.mxu0 0.0
      %115 = vmatpush1.msra.mxu0 0.0
      %116 = vmatprep.subr.mxu0 0.0
      %117 = vmatpush1.msra.mxu0 0.0
      %118 = vmatprep.subr.mxu0 0.0
      %119 = vmatpush1.msra.mxu0 0.0
      %120 = vmatprep.subr.mxu0 0.0
      %121 = vmatpush1.msra.mxu0 0.0
      %122 = vmatprep.subr.mxu0 0.0
      %123 = vmatpush1.msra.mxu0 %v87
      %124 = vmatprep.subr.mxu0 0.0
      %125 = vmatpush1.msra.mxu0 %v86
      %126 = vmatprep.subr.mxu0 0.0
      %127 = vmatpush1.msra.mxu0 %v85
      %128 = vmatprep.subr.mxu0 0.0
      %129 = vmatpush1.msra.mxu0 %v84
      %130 = vmatprep.subr.mxu0 0.0
      %131 = vmatpush2.msra.mxu0 0.0
      %132 = vmatprep.subr.mxu0 0.0
      %133 = vmatpush2.msra.mxu0 0.0
      %134 = vmatprep.subr.mxu0 0.0
      %135 = vmatpush2.msra.mxu0 0.0
      %136 = vmatprep.subr.mxu0 0.0
      %137 = vmatpush2.msra.mxu0 0.0
      %138 = vmatprep.subr.mxu0 0.0
      %139 = vmatpush2.msra.mxu0 0.0
      %140 = vmatprep.subr.mxu0 0.0
      %141 = vmatpush2.msra.mxu0 0.0
      %142 = vmatprep.subr.mxu0 0.0
      %143 = vmatpush2.msra.mxu0 0.0
      %144 = vmatprep.subr.mxu0 0.0
      %145 = vmatpush2.msra.mxu0 0.0
      %146 = vmatprep.subr.mxu0 0.0
      %147 = vmatpush2.msra.mxu0 0.0
      %148 = vmatprep.subr.mxu0 0.0
      %149 = vmatpush2.msra.mxu0 0.0
      %150 = vmatprep.subr.mxu0 0.0
      %151 = vmatpush2.msra.mxu0 0.0
      %152 = vmatprep.subr.mxu0 0.0
      %153 = vmatpush2.msra.mxu0 0.0
      %154 = vmatprep.subr.mxu0 0.0
      %155 = vmatpush2.msra.mxu0 0.0
      %156 = vmatprep.subr.mxu0 0.0
      %157 = vmatpush2.msra.mxu0 0.0
      %158 = vmatprep.subr.mxu0 0.0
      %159 = vmatpush2.msra.mxu0 0.0
      %160 = vmatprep.subr.mxu0 0.0
      %161 = vmatpush2.msra.mxu0 0.0
      %162 = vmatprep.mubr.f32.mxu0 0.0
      %163 = vmatmul.mubr.f32.gmra.mxu0 %v96
      %v164 = vpop.f32.mrf.mxu0
      %v165 = vadd.f32 %v93, %v164
      %v166 = vpop.f32.mrf.mxu0
      %167 = vdwg.mxu0
      %168 = vst [vmem:[#allocation6] sm:$0x3] %v165
    $region29: #{tpu_custom_call.1} parent=1 // pred_fallthru
      _
    // Predicated region
    $region30: #{tpu_custom_call.1} parent=1 // pred_check
      _
    $region31: #{tpu_custom_call.1} parent=1 // pred_check_branch
      %170 = sbr.rel (0) target = $region33
    $region32: #{tpu_custom_call.1} parent=1 // pred_region
      %s172 = ssub.s32 32, 32
      %173 = vsyncadd [#allocation5], %s172
      %s175 = sshll.u32 [#allocation6], 4
      %s176 = int_to_ptr.vmem [resolvable:$true] %s175
      %178 = dma.vmem_to_hbm [thread:$0]  %s176, 32, %s4, [#allocation5]
    $region33: #{tpu_custom_call.1} parent=1 // pred_fallthru
      _
    // Predicated region
    $region34: #{tpu_custom_call.1} parent=1 // pred_check
      _
    $region35: #{tpu_custom_call.1} parent=1 // pred_check_branch
      %180 = sbr.rel (0) target = $region37
    $region36: #{tpu_custom_call.1} parent=1 // pred_region
      %181 = dma.done [#allocation5], 32
    $region37: #{tpu_custom_call.1} parent=1 // pred_fallthru
      _
    %182 = vsyncpa [#allocation4], 1
    %183 = vsyncpa [#allocation5], 1

</llo_original>
